<compile_context>
chip_gen: v5e
topology: v5e:2x2
jax: 0.10.0
libtpu: 0.0.40
codegen_flags: <defaults>
</compile_context>

<pallas_src>
import functools

import jax
import jax.numpy as jnp
from jax.experimental import pallas as pl
from jax.experimental.pallas import tpu as pltpu


def _round_up(a, m):
    return (a + m - 1) // m * m


def _center_loss_kernel(x_ref, labels_ref, centers_ref, d_ref, *,
                        batch_size, block_rows, num_classes):
    i = pl.program_id(0)

    x = x_ref[...].astype(jnp.float32)            # (TB, D)
    centers = centers_ref[...].astype(jnp.float32)  # (C, D), resident in VMEM
    labels = labels_ref[...]                       # (TB, 1) int32

    # Gather centers[labels] with a one-hot matmul on the (otherwise idle) MXU:
    # no per-row DMA, no dynamic-gather lowering.
    class_ids = jax.lax.broadcasted_iota(jnp.int32, (block_rows, num_classes), 1)
    one_hot = (labels == class_ids).astype(jnp.float32)                 # (TB, C)
    gathered = jnp.dot(one_hot, centers, preferred_element_type=jnp.float32)  # (TB, D)

    # Fused squared distance: one sub + one mul + one cross-lane reduce.
    diff = x - gathered
    d = jnp.sum(diff * diff, axis=-1, keepdims=True)                    # (TB, 1)
    d = jnp.clip(d, 1e-9, 1e9)

    # Zero the rows that only exist because B was padded up to a TB multiple.
    row_ids = i * block_rows + jax.lax.broadcasted_iota(jnp.int32, (block_rows, 1), 0)
    d_ref[...] = jnp.where(row_ids < batch_size, d, 0.0)


def center_loss(x, centers, labels, *, block_rows=512):
    """x: (B, D) float, centers: (C, D) float, labels: (B,) int -> scalar f32."""
    B, D = x.shape
    C, Dc = centers.shape
    assert D == Dc, (D, Dc)

    # Row-block size: multiple of 8 (f32 sublane), no larger than padded B,
    # shrunk until the VMEM footprint fits a conservative ~40 MiB budget
    # (safe on v7x's 64 MiB physical VMEM; trivially small on v5e/v6e).
    TB = min(_round_up(block_rows, 8), _round_up(B, 8))

    def vmem_estimate(tb):
        return (2 * tb * D * x.dtype.itemsize          # x tiles (double-buffered)
                + 2 * C * D * centers.dtype.itemsize   # resident centers (2x margin)
                + 2 * tb * 4                           # labels tiles
                + 2 * tb * 4                           # output tiles
                + 4 * tb * max(D, C) * 4)              # in-kernel f32 temporaries

    while TB > 8 and vmem_estimate(TB) > 40 * 1024 * 1024:
        TB = _round_up(TB // 2, 8)

    B_pad = _round_up(B, TB)
    num_blocks = B_pad // TB

    labels_i32 = labels.astype(jnp.int32).reshape(B)
    if B_pad != B:
        x_p = jnp.zeros((B_pad, D), x.dtype).at[:B].set(x)
        labels_p = jnp.zeros((B_pad,), jnp.int32).at[:B].set(labels_i32)
    else:
        x_p = x
        labels_p = labels_i32
    labels_2d = labels_p.reshape(B_pad, 1)

    kernel = functools.partial(
        _center_loss_kernel, batch_size=B, block_rows=TB, num_classes=C)

    vmem_limit = int(min(48 * 1024 * 1024, max(16 * 1024 * 1024, 4 * vmem_estimate(TB))))

    d = pl.pallas_call(
        kernel,
        out_shape=jax.ShapeDtypeStruct((B_pad, 1), jnp.float32),
        grid=(num_blocks,),
        in_specs=[
            # x row block i
            pl.BlockSpec((TB, D), lambda i: (i, 0)),
            # labels row block i (as a (TB, 1) int32 column vector)
            pl.BlockSpec((TB, 1), lambda i: (i, 0)),
            # whole centers table, resident (constant block index -> one fetch)
            pl.BlockSpec((C, D), lambda i: (0, 0)),
        ],
        out_specs=pl.BlockSpec((TB, 1), lambda i: (i, 0)),
        compiler_params=pltpu.CompilerParams(
            dimension_semantics=("parallel",),     # independent blocks -> megacore-shardable
            vmem_limit_bytes=vmem_limit),
        cost_estimate=pl.CostEstimate(
            flops=2 * B * C * D + 3 * B * D,
            transcendentals=0,
            bytes_accessed=(B_pad * D * x.dtype.itemsize
                            + C * D * centers.dtype.itemsize
                            + B_pad * 4 + B_pad * 4)),
    )(x_p, labels_2d, centers)

    # Masked-out distmat entries each clamp to exactly 1e-9: B*(C-1) of them.
    filler = jnp.float32((C - 1) * 1e-9)
    return jnp.sum(d) / jnp.float32(B) + filler


if __name__ == "__main__":
    num_classes = 10
    feat_dim = 2
    batch = 8

    key = jax.random.PRNGKey(0)
    k_centers, k_x, k_labels = jax.random.split(key, 3)

    # Mirrors torch.randn(num_classes, feat_dim) parameter init.
    centers = jax.random.normal(k_centers, (num_classes, feat_dim), dtype=jnp.float32)
    x = jax.random.normal(k_x, (batch, feat_dim), dtype=jnp.float32)
    labels = jax.random.randint(k_labels, (batch,), 0, num_classes, dtype=jnp.int32)

    loss = center_loss(x, centers, labels)
    jax.block_until_ready(loss)

    # Pure-JAX reference (same math as the PyTorch forward).
    x2 = jnp.sum(x ** 2, axis=1, keepdims=True)
    c2 = jnp.sum(centers ** 2, axis=1, keepdims=True).T
    distmat = x2 + c2 - 2.0 * (x @ centers.T)
    mask = (labels[:, None] == jnp.arange(num_classes)[None, :]).astype(jnp.float32)
    ref = jnp.sum(jnp.clip(distmat * mask, 1e-9, 1e9)) / batch

    assert jnp.allclose(loss, ref, rtol=1e-5, atol=1e-5), (loss, ref)
    print("KERNEL_OK")
</pallas_src>

<mosaic_0001>
module attributes {stable_mosaic.version = 11 : i64} {
  func.func @_center_loss_kernel(%arg0: i32, %arg1: memref<8x2xf32, #tpu.memory_space<vmem>>, %arg2: memref<8x1xi32, #tpu.memory_space<vmem>>, %arg3: memref<10x2xf32, #tpu.memory_space<vmem>>, %arg4: memref<8x1xf32, #tpu.memory_space<vmem>>) attributes {dimension_semantics = [#tpu.dimension_semantics<parallel>], iteration_bounds = array<i64: 1>, scalar_prefetch = 0 : i64, scratch_operands = 0 : i64, tpu.core_type = #tpu.core_type<tc>, window_params = [{transform_indices = @transform_0, window_bounds = array<i64: 8, 2>}, {transform_indices = @transform_1, window_bounds = array<i64: 8, 1>}, {pipeline_mode = #tpu.pipeline_mode<synchronous>, transform_indices = @transform_2, window_bounds = array<i64: 10, 2>}, {transform_indices = @transform_3, window_bounds = array<i64: 8, 1>}]} {
    %c0 = arith.constant 0 : index
    %c0_0 = arith.constant 0 : index
    %0 = vector.load %arg1[%c0, %c0_0] : memref<8x2xf32, #tpu.memory_space<vmem>>, vector<8x2xf32>
    %c0_1 = arith.constant 0 : index
    %c0_2 = arith.constant 0 : index
    %1 = vector.load %arg3[%c0_1, %c0_2] : memref<10x2xf32, #tpu.memory_space<vmem>>, vector<10x2xf32>
    %c0_3 = arith.constant 0 : index
    %c0_4 = arith.constant 0 : index
    %2 = vector.load %arg2[%c0_3, %c0_4] : memref<8x1xi32, #tpu.memory_space<vmem>>, vector<8x1xi32>
    %3 = tpu.iota {dimensions = array<i32: 1>} : vector<8x10xi32>
    %4 = vector.broadcast %2 : vector<8x1xi32> to vector<8x10xi32>
    %5 = arith.cmpi eq, %4, %3 : vector<8x10xi32>
    %6 = arith.extui %5 : vector<8x10xi1> to vector<8x10xi32>
    %7 = arith.sitofp %6 : vector<8x10xi32> to vector<8x10xf32>
    %cst = arith.constant dense<0.000000e+00> : vector<8x2xf32>
    %8 = tpu.matmul %7, %1, %cst {dimension_numbers = #tpu.dot_dimension_numbers<[1], [0], [0], [1], [0, 0, 1, 1], [], []>} : vector<8x10xf32>, vector<10x2xf32>, vector<8x2xf32> -> vector<8x2xf32>
    %9 = arith.subf %0, %8 : vector<8x2xf32>
    %10 = arith.mulf %9, %9 : vector<8x2xf32>
    %cst_5 = arith.constant dense<0.000000e+00> : vector<8xf32>
    %11 = vector.multi_reduction <add>, %10, %cst_5 [1] : vector<8x2xf32> to vector<8xf32>
    %12 = vector.shape_cast %11 : vector<8xf32> to vector<8x1xf32>
    %cst_6 = arith.constant 9.99999971E-10 : f32
    %cst_7 = arith.constant 1.000000e+09 : f32
    %13 = vector.broadcast %cst_6 : f32 to vector<8x1xf32>
    %14 = arith.maximumf %13, %12 : vector<8x1xf32>
    %15 = vector.broadcast %cst_7 : f32 to vector<8x1xf32>
    %16 = arith.minimumf %15, %14 : vector<8x1xf32>
    %c8_i32 = arith.constant 8 : i32
    %17 = arith.muli %arg0, %c8_i32 : i32
    %18 = tpu.iota {dimensions = array<i32: 0>} : vector<8x1xi32>
    %19 = vector.broadcast %17 : i32 to vector<8x1xi32>
    %20 = arith.addi %19, %18 : vector<8x1xi32>
    %c8_i32_8 = arith.constant 8 : i32
    %21 = vector.broadcast %c8_i32_8 : i32 to vector<8x1xi32>
    %22 = arith.cmpi slt, %20, %21 : vector<8x1xi32>
    %cst_9 = arith.constant 0.000000e+00 : f32
    %23 = vector.broadcast %cst_9 : f32 to vector<8x1xf32>
    %24 = arith.select %22, %16, %23 : vector<8x1xi1>, vector<8x1xf32>
    %c0_10 = arith.constant 0 : index
    %c0_11 = arith.constant 0 : index
    %25 = vector.load %arg4[%c0_10, %c0_11] : memref<8x1xf32, #tpu.memory_space<vmem>>, vector<8x1xf32>
    tpu.vector_store %arg4[%c0_10, %c0_11], %24 {strides = array<i32>} : memref<8x1xf32, #tpu.memory_space<vmem>>, vector<8x1xf32>,
    return
  }
  func.func @transform_0(%arg0: i32) -> (i32, i32) {
    %c0_i32 = arith.constant 0 : i32
    %c0_i32_0 = arith.constant 0 : i32
    return %arg0, %c0_i32 : i32, i32
  }
  func.func @transform_1(%arg0: i32) -> (i32, i32) {
    %c0_i32 = arith.constant 0 : i32
    %c0_i32_0 = arith.constant 0 : i32
    return %arg0, %c0_i32 : i32, i32
  }
  func.func @transform_2(%arg0: i32) -> (i32, i32) {
    %c0_i32 = arith.constant 0 : i32
    %c0_i32_0 = arith.constant 0 : i32
    %c0_i32_1 = arith.constant 0 : i32
    return %c0_i32, %c0_i32_0 : i32, i32
  }
  func.func @transform_3(%arg0: i32) -> (i32, i32) {
    %c0_i32 = arith.constant 0 : i32
    %c0_i32_0 = arith.constant 0 : i32
    return %arg0, %c0_i32 : i32, i32
  }
}

</mosaic_0001>

<llo_original>
// kernel: tpu_custom_call.1
$region0: #{tpu_custom_call.1}
  #allocation0 [shape = 'u32[]', space=smem, size = 0x4, offset = 0x4, fixed_abs, tag = 'smem constant byte address 0x4 - core index']
  #allocation1 [shape = 'u32[72,128]{1,0:T(1,128)}', space=vmem, size = 0x9000, scoped, tag = 'internal scratch']
  %s0 = inlined_call_operand.vmem [shape: f32[8,2], index: 0, kind: input, shape index: {}]
  %s1 = inlined_call_operand.vmem [shape: s32[8,1], index: 1, kind: input, shape index: {}]
  %s2 = inlined_call_operand.vmem [shape: f32[10,2], index: 2, kind: input, shape index: {}]
  %s3 = inlined_call_operand.vmem [shape: f32[8,1], index: 3, kind: output, shape index: {}]
  %s4 = sld [smem:[#allocation0]]
  $region22: #{tpu_custom_call.1} parent=0
    _
  %s6 = ssub.s32 1, %s4
  %s7 = scalar_select 0, %s6, %s4
  // Predicated region
  $region2: #{tpu_custom_call.1} parent=0 // pred_check
    _
  $region3: #{tpu_custom_call.1} parent=0 // pred_check_branch
    %9 = sbr.rel (0) target = $region5
  $region4: #{tpu_custom_call.1} parent=0 // pred_region
    _
  $region5: #{tpu_custom_call.1} parent=0 // pred_fallthru
    _
  // Predicated region
  $region6: #{tpu_custom_call.1} parent=0 // pred_check
    _
  $region7: #{tpu_custom_call.1} parent=0 // pred_check_branch
    %11 = sbr.rel (0) target = $region9
  $region8: #{tpu_custom_call.1} parent=0 // pred_region
    _
  $region9: #{tpu_custom_call.1} parent=0 // pred_fallthru
    _
  // Predicated region
  $region10: #{tpu_custom_call.1} parent=0 // pred_check
    _
  $region11: #{tpu_custom_call.1} parent=0 // pred_check_branch
    %13 = sbr.rel (0) target = $region13
  $region12: #{tpu_custom_call.1} parent=0 // pred_region
    _
  $region13: #{tpu_custom_call.1} parent=0 // pred_fallthru
    _
  %v14 = vld [vmem:[%s0] sm:$0xff]
  %v15 = vld [vmem:[%s2] sm:$0xff]
  %v16 = vld [vmem:[%s2 + $0x8] sm:$0x3]
  %v17 = vld [vmem:[%s1] sm:$0xff]
  %v18 = vlaneseq
  %v19 = vand.u32 %v18, 127
  %20 = vset.pattern.permute.xlu0 0
  %21 = vperm.xlu0 %20, %v17
  %v22 = vpop.permute.xlu0 %21
  %vm23 = vcmp.eq.s32.totalorder %v22, %v19
  %v24 = vsel %vm23, 1, 0
  %v25 = vcvt.s32.f32 %v24
  %vm26 = vcmask 80896
  %v28 = vsel %vm26, %v25, 0
  %vm30 = vcmask 1041408
  %v32 = vsel %vm30, %v16, 0
  %34 = vmatpush.msra.mxu0 0.0
  %35 = vmatpush.msra.mxu0 0.0
  %36 = vmatpush.msra.mxu0 0.0
  %37 = vmatpush.msra.mxu0 0.0
  %38 = vmatpush.msra.mxu0 0.0
  %39 = vmatpush.msra.mxu0 0.0
  %40 = vmatpush.msra.mxu0 0.0
  %41 = vmatpush.msra.mxu0 0.0
  %42 = vmatpush.msra.mxu0 0.0
  %43 = vmatpush.msra.mxu0 0.0
  %44 = vmatpush.msra.mxu0 0.0
  %45 = vmatpush.msra.mxu0 0.0
  %46 = vmatpush.msra.mxu0 0.0
  %47 = vmatpush.msra.mxu0 0.0
  %48 = vmatpush.msra.mxu0 %v32
  %49 = vmatpush.msra.mxu0 %v15
  %50 = vmatmul.f32.gmra.mxu0 %v28
  %v51 = vpop.f32.mrf.mxu0
  %v52 = vadd.f32 0.0, %v51
  %53 = vdwg.mxu0
  %v54 = vsub.f32 %v14, %v52
  %v55 = vmul.f32 %v54, %v54
  %vm56 = vcmask 15360
  %v57 = vsel %vm56, %v55, 0.0
  %58 = vadd.xlane.f32.xlu0 %v57
  %v59 = vpop.xlane.xlu0 %58
  %v60 = vmax.f32 %v59, 1e-09
  %v61 = vmin.f32 %v60, 1e+09
  %s62 = smul.u32 0, 8
  %v63 = vlaneseq
  %v64 = vshrl.u32 %v63, 7
  %v65 = vstv %s62
  %v66 = vadd.s32 %v65, %v64
  %vm67 = vcmp.lt.s32.totalorder %v66, 8
  %v68 = vsel %vm67, %v61, 0.0
  %vm69 = vcmask 7168
  %70 = vst.msk [vmem:[%s3] sm:$0xff] %vm69, %v68
  // Predicated region
  $region14: #{tpu_custom_call.1} parent=0 // pred_check
    _
  $region15: #{tpu_custom_call.1} parent=0 // pred_check_branch
    %72 = sbr.rel (0) target = $region17
  $region16: #{tpu_custom_call.1} parent=0 // pred_region
    _
  $region17: #{tpu_custom_call.1} parent=0 // pred_fallthru
    _
  // Predicated region
  $region18: #{tpu_custom_call.1} parent=0 // pred_check
    _
  $region19: #{tpu_custom_call.1} parent=0 // pred_check_branch
    %74 = sbr.rel (0) target = $region21
  $region20: #{tpu_custom_call.1} parent=0 // pred_region
    _
  $region21: #{tpu_custom_call.1} parent=0 // pred_fallthru
    _

</llo_original>
